<compile_context>
chip_gen: v7x
topology: tpu7x:2x2x1
jax: 0.10.0
libtpu: 0.0.40
codegen_flags: <defaults>
</compile_context>

<pallas_src>
import jax
import jax.numpy as jnp
from jax.experimental import pallas as pl
from jax.experimental.pallas import tpu as pltpu


TK_CAP = 512  # K tile cap (multiple of 128)


def _round_up(a, b):
    return (a + b - 1) // b * b


def _k_tiling(K):
    """K tile and padded K. tk = min(round_up(K,128), TK_CAP); Kp % tk == 0."""
    tk = min(_round_up(max(K, 1), 128), TK_CAP)
    kp = _round_up(max(K, 1), tk)
    return tk, kp


def _sublane_packing(dtype):
    """Rows per packed sublane group: 8 (f32) / 16 (bf16) / 32 (i8/fp8)."""
    return max(8, 32 // jnp.dtype(dtype).itemsize)


def _vmem_limit_bytes():
    """Generation-gated VMEM budget (per-core 64 MiB on v7x, 128 MiB on v5e/v6e)."""
    try:
        cap = pltpu.get_tpu_info().vmem_capacity_bytes
    except Exception:
        return 48 << 20
    if cap >= (100 << 20):
        return 96 << 20        # v5e / v6e: plenty of headroom
    return 48 << 20            # v7x: 75% of the 64 MiB per-TC VMEM


def prepare_linear_allreduce_weight(weight):
    """One-time (load-time) weight prep: (out,in) -> (in,out) transpose plus
    zero-padding of the contraction axis up to the K tile. Doing this per
    forward call costs a full HBM->HBM copy of the weight each step; hoist it.
    """
    _, K = weight.shape
    _, kp = _k_tiling(K)
    w_t = weight.T                       # (K, N)
    if kp != K:
        w_t = jnp.pad(w_t, ((0, kp - K), (0, 0)))
    return w_t                           # (Kp, N)


def _linear_allreduce_kernel_direct(x_ref, w_ref, b_ref, o_ref):
    # f32 path: accumulate directly into the resident output block.
    # x_ref: (tm, tk), w_ref: (tk, tn) [pre-transposed], b_ref: (1, tn),
    # o_ref: (tm, tn) -- resident across the K grid axis.
    k = pl.program_id(2)

    @pl.when(k == 0)
    def _():
        # Seed the accumulator with the bias: removes a full-tile RMW on the
        # last K step. Valid because the tp_world_size==1 all-reduce is the
        # identity.
        # TODO(synk): with a real mp_group the bias must be added AFTER the
        # cross-device reduce, not folded into the local accumulation.
        o_ref[...] = jnp.broadcast_to(b_ref[...], o_ref.shape).astype(o_ref.dtype)

    o_ref[...] += jnp.dot(x_ref[...], w_ref[...], preferred_element_type=jnp.float32)


def _linear_allreduce_kernel_acc(x_ref, w_ref, b_ref, o_ref, acc_ref):
    # Low-precision path: f32 VMEM accumulator (seeded with bias), cast once on
    # the last K step.
    k = pl.program_id(2)

    @pl.when(k == 0)
    def _():
        acc_ref[...] = jnp.broadcast_to(
            b_ref[...].astype(jnp.float32), acc_ref.shape)

    acc_ref[...] += jnp.dot(x_ref[...], w_ref[...],
                            preferred_element_type=jnp.float32)

    @pl.when(k == pl.num_programs(2) - 1)
    def _():
        o_ref[...] = acc_ref[...].astype(o_ref.dtype)


def _weight_spec(tk, tn, depth):
    idx = lambda i, j, k: (k, j)
    if depth is not None:
        try:
            return pl.BlockSpec((tk, tn), idx, pipeline_mode=pl.Buffered(depth))
        except TypeError:
            pass  # older BlockSpec without pipeline_mode: default double-buffer
    return pl.BlockSpec((tk, tn), idx)


@jax.jit
def linear_allreduce(x, w_t, bias=None):
    """y = x @ weight.T + bias, with weight already prepared as w_t = pad(weight.T).

    x:    (..., K)
    w_t:  (Kp, N)   from prepare_linear_allreduce_weight(weight)
    bias: (N,) or None
    """
    orig_shape = x.shape
    K = orig_shape[-1]
    Kp, N = w_t.shape
    tk = min(Kp, TK_CAP)
    assert Kp % tk == 0 and Kp >= K

    M = 1
    for d in orig_shape[:-1]:
        M *= d
    x2d = x.reshape(M, K)

    # Zero-pad the contraction axis of the activation only (weight is already
    # padded at load time). Zeros contribute nothing to the reduction.
    if Kp != K:
        x2d = jnp.pad(x2d, ((0, 0), (0, Kp - K)))

    if bias is None:
        bias = jnp.zeros((N,), dtype=x.dtype)
    b2d = bias.reshape(1, N)

    # --- adaptive tile selection (all (sublane,128)-aligned) ---
    pack = _sublane_packing(x.dtype)
    vmem_limit = _vmem_limit_bytes()
    decode = M <= 256
    if decode:
        tm = min(_round_up(max(M, 1), pack), 256)
        tn = min(_round_up(N, 128), 512)
        # Keep both TensorCores of a 2-TC chip (v7x) busy: make sure there are
        # at least 2 blocks on a 'parallel' axis. Near-free on 1-TC chips.
        if pl.cdiv(M, tm) * pl.cdiv(N, tn) < 2 and N >= 256:
            tn = _round_up(pl.cdiv(N, 2), 128)
    else:
        tm = min(_round_up(M, pack), 512)
        tn = min(_round_up(N, 128), 1024)

    grid = (pl.cdiv(M, tm), pl.cdiv(N, tn), Kp // tk)

    use_acc_scratch = x.dtype != jnp.float32
    kernel = (_linear_allreduce_kernel_acc if use_acc_scratch
              else _linear_allreduce_kernel_direct)
    scratch = [pltpu.VMEM((tm, tn), jnp.float32)] if use_acc_scratch else []

    # Deeper weight prefetch in the weight-streaming (decode) regime; depth is
    # gated on VMEM generation (4 on 128-MiB chips, 3 on v7x's 64 MiB).
    if decode and grid[2] > 2:
        depth = 4 if vmem_limit >= (96 << 20) else 3
    else:
        depth = None
    w_spec = _weight_spec(tk, tn, depth)

    itemsize = jnp.dtype(x.dtype).itemsize
    cost = pl.CostEstimate(
        flops=2 * M * Kp * N,
        transcendentals=0,
        bytes_accessed=(M * Kp + Kp * N + M * N) * itemsize,
    )

    out2d = pl.pallas_call(
        kernel,
        out_shape=jax.ShapeDtypeStruct((M, N), x.dtype),
        grid_spec=pltpu.PrefetchScalarGridSpec(
            num_scalar_prefetch=0,
            grid=grid,
            in_specs=[
                pl.BlockSpec((tm, tk), lambda i, j, k: (i, k)),   # x    (M, Kp)
                w_spec,                                           # w.T  (Kp, N)
                pl.BlockSpec((1, tn), lambda i, j, k: (0, j)),    # bias (1, N)
            ],
            out_specs=pl.BlockSpec((tm, tn), lambda i, j, k: (i, j)),
            scratch_shapes=scratch,
        ),
        compiler_params=pltpu.CompilerParams(
            dimension_semantics=("parallel", "parallel", "arbitrary"),
            vmem_limit_bytes=vmem_limit,
        ),
        cost_estimate=cost,
    )(x2d, w_t, b2d)

    return out2d.reshape(*orig_shape[:-1], N)


if __name__ == "__main__":
    # Small shapes consistent with a linear layer: batch=2, seq=8,
    # in_features=256, out_features=128.
    batch, seq, in_features, out_features = 2, 8, 256, 128

    key = jax.random.PRNGKey(0)
    kx, kw, kb = jax.random.split(key, 3)
    x = jax.random.normal(kx, (batch, seq, in_features), dtype=jnp.float32)
    # Deterministic "module" parameters (PyTorch nn.Linear layout: (out, in)).
    weight = jax.random.normal(kw, (out_features, in_features), dtype=jnp.float32) * 0.02
    bias = jax.random.normal(kb, (out_features,), dtype=jnp.float32) * 0.02

    # One-time weight prep (transpose + K-pad), hoisted out of the forward path.
    w_t = jax.block_until_ready(prepare_linear_allreduce_weight(weight))

    out = linear_allreduce(x, w_t, bias)
    out = jax.block_until_ready(out)

    # Reference check against plain JAX.
    ref = jnp.matmul(x, weight.T) + bias
    assert out.shape == (batch, seq, out_features)
    assert jnp.allclose(out, ref, atol=1e-3, rtol=1e-3)

    print("KERNEL_OK")
</pallas_src>

<mosaic_0001>
module attributes {stable_mosaic.version = 11 : i64} {
  func.func @_linear_allreduce_kernel_direct(%arg0: i32, %arg1: i32, %arg2: i32, %arg3: memref<16x256xf32, #tpu.memory_space<vmem>>, %arg4: memref<256x128xf32, #tpu.memory_space<vmem>>, %arg5: memref<1x128xf32, #tpu.memory_space<vmem>>, %arg6: memref<16x128xf32, #tpu.memory_space<vmem>>) attributes {dimension_semantics = [#tpu.dimension_semantics<parallel>, #tpu.dimension_semantics<parallel>, #tpu.dimension_semantics<arbitrary>], iteration_bounds = array<i64: 1, 1, 1>, scalar_prefetch = 0 : i64, scratch_operands = 0 : i64, tpu.core_type = #tpu.core_type<tc>, window_params = [{transform_indices = @transform_0, window_bounds = array<i64: 16, 256>}, {transform_indices = @transform_1, window_bounds = array<i64: 256, 128>}, {transform_indices = @transform_2, window_bounds = array<i64: 1, 128>}, {transform_indices = @transform_3, window_bounds = array<i64: 16, 128>}]} {
    %c0_i32 = arith.constant 0 : i32
    %0 = arith.cmpi eq, %arg2, %c0_i32 : i32
    %1 = arith.extui %0 : i1 to i32
    %c0_i32_0 = arith.constant 0 : i32
    %2 = arith.cmpi ne, %1, %c0_i32_0 : i32
    scf.if %2 {
      %c0_8 = arith.constant 0 : index
      %c0_9 = arith.constant 0 : index
      %9 = vector.load %arg5[%c0_8, %c0_9] : memref<1x128xf32, #tpu.memory_space<vmem>>, vector<1x128xf32>
      %10 = vector.shape_cast %9 : vector<1x128xf32> to vector<1x128xf32>
      %11 = vector.broadcast %10 : vector<1x128xf32> to vector<16x128xf32>
      %c0_10 = arith.constant 0 : index
      %c0_11 = arith.constant 0 : index
      %12 = vector.load %arg6[%c0_10, %c0_11] : memref<16x128xf32, #tpu.memory_space<vmem>>, vector<16x128xf32>
      tpu.vector_store %arg6[%c0_10, %c0_11], %11 {strides = array<i32>} : memref<16x128xf32, #tpu.memory_space<vmem>>, vector<16x128xf32>,
    } else {
    }
    %c0 = arith.constant 0 : index
    %c0_1 = arith.constant 0 : index
    %3 = vector.load %arg6[%c0, %c0_1] : memref<16x128xf32, #tpu.memory_space<vmem>>, vector<16x128xf32>
    %c0_2 = arith.constant 0 : index
    %c0_3 = arith.constant 0 : index
    %4 = vector.load %arg3[%c0_2, %c0_3] : memref<16x256xf32, #tpu.memory_space<vmem>>, vector<16x256xf32>
    %c0_4 = arith.constant 0 : index
    %c0_5 = arith.constant 0 : index
    %5 = vector.load %arg4[%c0_4, %c0_5] : memref<256x128xf32, #tpu.memory_space<vmem>>, vector<256x128xf32>
    %cst = arith.constant dense<0.000000e+00> : vector<16x128xf32>
    %6 = tpu.matmul %4, %5, %cst {dimension_numbers = #tpu.dot_dimension_numbers<[1], [0], [0], [1], [0, 0, 1, 1], [], []>} : vector<16x256xf32>, vector<256x128xf32>, vector<16x128xf32> -> vector<16x128xf32>
    %7 = arith.addf %3, %6 : vector<16x128xf32>
    %c0_6 = arith.constant 0 : index
    %c0_7 = arith.constant 0 : index
    %8 = vector.load %arg6[%c0_6, %c0_7] : memref<16x128xf32, #tpu.memory_space<vmem>>, vector<16x128xf32>
    tpu.vector_store %arg6[%c0_6, %c0_7], %7 {strides = array<i32>} : memref<16x128xf32, #tpu.memory_space<vmem>>, vector<16x128xf32>,
    return
  }
  func.func @transform_0(%arg0: i32, %arg1: i32, %arg2: i32) -> (i32, i32) {
    %c0_i32 = arith.constant 0 : i32
    return %arg0, %arg2 : i32, i32
  }
  func.func @transform_1(%arg0: i32, %arg1: i32, %arg2: i32) -> (i32, i32) {
    %c0_i32 = arith.constant 0 : i32
    return %arg2, %arg1 : i32, i32
  }
  func.func @transform_2(%arg0: i32, %arg1: i32, %arg2: i32) -> (i32, i32) {
    %c0_i32 = arith.constant 0 : i32
    %c0_i32_0 = arith.constant 0 : i32
    return %c0_i32, %arg1 : i32, i32
  }
  func.func @transform_3(%arg0: i32, %arg1: i32, %arg2: i32) -> (i32, i32) {
    %c0_i32 = arith.constant 0 : i32
    return %arg0, %arg1 : i32, i32
  }
}

</mosaic_0001>

<llo_original>
// kernel: linear_allreduce.1
$region0: #{linear_allreduce.1}
  #allocation0 [shape = 'u32[]', space=smem, size = 0x4, offset = 0x4, fixed_abs, tag = 'smem constant byte address 0x4 - core index']
  #allocation1 [shape = 'u32[144,128]{1,0:T(1,128)}', space=vmem, size = 0x12000, scoped, tag = 'internal scratch']
  %s0 = inlined_call_operand.hbm [shape: f32[16,256], index: 0, kind: input, shape index: {}]
  %s1 = inlined_call_operand.hbm [shape: f32[256,128], index: 1, kind: input, shape index: {}]
  %s2 = inlined_call_operand.vmem [shape: f32[1,128], index: 2, kind: input, shape index: {}]
  %s3 = inlined_call_operand.hbm [shape: f32[16,128], index: 3, kind: output, shape index: {}]
  %s4 = sld [smem:[#allocation0]]
  $region34: #{linear_allreduce.1} parent=0
    _
  %s6 = ssub.s32 1, %s4
  %s7 = scalar_select 0, %s6, %s4
  $region1: #{linear_allreduce.1} parent=0
    #allocation2 [shape = 'u8[16384]{0}', space=vmem, size = 0x4000, scoped, tag = 'input window, operand 0, single buffered']
    #allocation3 [shape = 's32[1]{0}', space=sflag, size = 0x4, scoped, tag = 'scoped memory for linear_allreduce.1']
    #allocation4 [shape = 's32[1]{0}', space=sflag, size = 0x4, scoped, tag = 'scoped memory for linear_allreduce.1']
    #allocation5 [shape = 'u8[131072]{0}', space=vmem, size = 0x20000, scoped, tag = 'input window, operand 1, single buffered']
    #allocation6 [shape = 's32[1]{0}', space=sflag, size = 0x4, scoped, tag = 'scoped memory for linear_allreduce.1']
    #allocation7 [shape = 'u8[8192]{0}', space=vmem, size = 0x2000, scoped, tag = 'output window, operand 0, single buffered']
    %8 = vsyncpa [#allocation3], 0
    %9 = vsyncpa [#allocation6], 0
    %10 = vsyncpa [#allocation4], 0
    // Predicated region
    $region2: #{linear_allreduce.1} parent=1 // pred_check
      _
    $region3: #{linear_allreduce.1} parent=1 // pred_check_branch
      %12 = sbr.rel (0) target = $region5
    $region4: #{linear_allreduce.1} parent=1 // pred_region
      %s14 = ssub.s32 512, 512
      %15 = vsyncadd [#allocation3], %s14
      %s16 = sshll.u32 [#allocation2], 4
      %s17 = int_to_ptr.vmem [resolvable:$true] %s16
      %22 = dma.hbm_to_vmem [thread:$0]  %s0, 512, %s17, [#allocation3], 256, 256, 16
    $region5: #{linear_allreduce.1} parent=1 // pred_fallthru
      _
    // Predicated region
    $region6: #{linear_allreduce.1} parent=1 // pred_check
      _
    $region7: #{linear_allreduce.1} parent=1 // pred_check_branch
      %24 = sbr.rel (0) target = $region9
    $region8: #{linear_allreduce.1} parent=1 // pred_region
      %s26 = ssub.s32 4096, 4096
      %27 = vsyncadd [#allocation6], %s26
      %s28 = sshll.u32 [#allocation5], 4
      %s29 = int_to_ptr.vmem [resolvable:$true] %s28
      %34 = dma.hbm_to_vmem [thread:$0]  %s1, 4096, %s29, [#allocation6], 128, 128, 8
    $region9: #{linear_allreduce.1} parent=1 // pred_fallthru
      _
    // Predicated region
    $region10: #{linear_allreduce.1} parent=1 // pred_check
      _
    $region11: #{linear_allreduce.1} parent=1 // pred_check_branch
      %36 = sbr.rel (0) target = $region13
    $region12: #{linear_allreduce.1} parent=1 // pred_region
      _
    $region13: #{linear_allreduce.1} parent=1 // pred_fallthru
      _
    // Predicated region
    $region14: #{linear_allreduce.1} parent=1 // pred_check
      _
    $region15: #{linear_allreduce.1} parent=1 // pred_check_branch
      %38 = sbr.rel (0) target = $region17
    $region16: #{linear_allreduce.1} parent=1 // pred_region
      %39 = dma.done [#allocation3], 512
    $region17: #{linear_allreduce.1} parent=1 // pred_fallthru
      _
    // Predicated region
    $region18: #{linear_allreduce.1} parent=1 // pred_check
      _
    $region19: #{linear_allreduce.1} parent=1 // pred_check_branch
      %41 = sbr.rel (0) target = $region21
    $region20: #{linear_allreduce.1} parent=1 // pred_region
      %42 = dma.done [#allocation6], 4096
    $region21: #{linear_allreduce.1} parent=1 // pred_fallthru
      _
    %p43 = scmp.eq.s32.totalorder 0, 0
    // Predicated region
    $region22: #{linear_allreduce.1} parent=1 // pred_check
      %p44 = pneg %p43
    $region23: #{linear_allreduce.1} parent=1 // pred_check_branch
      %46 = sbr.rel (%p44) target = $region25
    $region24: #{linear_allreduce.1} parent=1 // pred_region
      %v47 = vld [vmem:[%s2] sm:$0x1]
      %v49 = vlaneseq
      %v50 = vshrl.u32 %v49, 7
      %v51 = vsub.s32 0, %v50
      %v52 = vrot.slane %v47, %v51
      %54 = vst [vmem:[#allocation7] sm:$0xff] %v52
      %55 = vst [vmem:[#allocation7 + $0x8] sm:$0xff] %v52
    $region25: #{linear_allreduce.1} parent=1 // pred_fallthru
      _
    %v56 = vld [vmem:[#allocation7] sm:$0xff]
    %v57 = vld [vmem:[#allocation7 + $0x8] sm:$0xff]
    %v58 = vld [vmem:[#allocation2] sm:$0xff]
    %v59 = vld [vmem:[#allocation2 + $0x8] sm:$0xff]
    %v60 = vld [vmem:[#allocation2 + $0x10] sm:$0xff]
    %v61 = vld [vmem:[#allocation2 + $0x18] sm:$0xff]
    %v62 = vld [vmem:[#allocation5] sm:$0xff]
    %v63 = vld [vmem:[#allocation5 + $0x8] sm:$0xff]
    %v64 = vld [vmem:[#allocation5 + $0x10] sm:$0xff]
    %v65 = vld [vmem:[#allocation5 + $0x18] sm:$0xff]
    %v66 = vld [vmem:[#allocation5 + $0x20] sm:$0xff]
    %v67 = vld [vmem:[#allocation5 + $0x28] sm:$0xff]
    %v68 = vld [vmem:[#allocation5 + $0x30] sm:$0xff]
    %v69 = vld [vmem:[#allocation5 + $0x38] sm:$0xff]
    %v70 = vld [vmem:[#allocation5 + $0x40] sm:$0xff]
    %v71 = vld [vmem:[#allocation5 + $0x48] sm:$0xff]
    %v72 = vld [vmem:[#allocation5 + $0x50] sm:$0xff]
    %v73 = vld [vmem:[#allocation5 + $0x58] sm:$0xff]
    %v74 = vld [vmem:[#allocation5 + $0x60] sm:$0xff]
    %v75 = vld [vmem:[#allocation5 + $0x68] sm:$0xff]
    %v76 = vld [vmem:[#allocation5 + $0x70] sm:$0xff]
    %v77 = vld [vmem:[#allocation5 + $0x78] sm:$0xff]
    %v78 = vld [vmem:[#allocation5 + $0x80] sm:$0xff]
    %v79 = vld [vmem:[#allocation5 + $0x88] sm:$0xff]
    %v80 = vld [vmem:[#allocation5 + $0x90] sm:$0xff]
    %v81 = vld [vmem:[#allocation5 + $0x98] sm:$0xff]
    %v82 = vld [vmem:[#allocation5 + $0xa0] sm:$0xff]
    %v83 = vld [vmem:[#allocation5 + $0xa8] sm:$0xff]
    %v84 = vld [vmem:[#allocation5 + $0xb0] sm:$0xff]
    %v85 = vld [vmem:[#allocation5 + $0xb8] sm:$0xff]
    %v86 = vld [vmem:[#allocation5 + $0xc0] sm:$0xff]
    %v87 = vld [vmem:[#allocation5 + $0xc8] sm:$0xff]
    %v88 = vld [vmem:[#allocation5 + $0xd0] sm:$0xff]
    %v89 = vld [vmem:[#allocation5 + $0xd8] sm:$0xff]
    %v90 = vld [vmem:[#allocation5 + $0xe0] sm:$0xff]
    %v91 = vld [vmem:[#allocation5 + $0xe8] sm:$0xff]
    %v92 = vld [vmem:[#allocation5 + $0xf0] sm:$0xff]
    %v93 = vld [vmem:[#allocation5 + $0xf8] sm:$0xff]
    %94 = vmatprep.subr.mxu0 0.0
    %95 = vmatpush1.msra.mxu0 %v62
    %96 = vmatprep.subr.mxu0 0.0
    %97 = vmatpush1.msra.mxu0 %v63
    %98 = vmatprep.subr.mxu0 0.0
    %99 = vmatpush1.msra.mxu0 %v64
    %100 = vmatprep.subr.mxu0 0.0
    %101 = vmatpush1.msra.mxu0 %v65
    %102 = vmatprep.subr.mxu0 0.0
    %103 = vmatpush1.msra.mxu0 %v66
    %104 = vmatprep.subr.mxu0 0.0
    %105 = vmatpush1.msra.mxu0 %v67
    %106 = vmatprep.subr.mxu0 0.0
    %107 = vmatpush1.msra.mxu0 %v68
    %108 = vmatprep.subr.mxu0 0.0
    %109 = vmatpush1.msra.mxu0 %v69
    %110 = vmatprep.subr.mxu0 0.0
    %111 = vmatpush1.msra.mxu0 %v70
    %112 = vmatprep.subr.mxu0 0.0
    %113 = vmatpush1.msra.mxu0 %v71
    %114 = vmatprep.subr.mxu0 0.0
    %115 = vmatpush1.msra.mxu0 %v72
    %116 = vmatprep.subr.mxu0 0.0
    %117 = vmatpush1.msra.mxu0 %v73
    %118 = vmatprep.subr.mxu0 0.0
    %119 = vmatpush1.msra.mxu0 %v74
    %120 = vmatprep.subr.mxu0 0.0
    %121 = vmatpush1.msra.mxu0 %v75
    %122 = vmatprep.subr.mxu0 0.0
    %123 = vmatpush1.msra.mxu0 %v76
    %124 = vmatprep.subr.mxu0 0.0
    %125 = vmatpush1.msra.mxu0 %v77
    %126 = vmatprep.subr.mxu0 0.0
    %127 = vmatpush1.msra.mxu0 %v78
    %128 = vmatprep.subr.mxu0 0.0
    %129 = vmatpush1.msra.mxu0 %v79
    %130 = vmatprep.subr.mxu0 0.0
    %131 = vmatpush1.msra.mxu0 %v80
    %132 = vmatprep.subr.mxu0 0.0
    %133 = vmatpush1.msra.mxu0 %v81
    %134 = vmatprep.subr.mxu0 0.0
    %135 = vmatpush1.msra.mxu0 %v82
    %136 = vmatprep.subr.mxu0 0.0
    %137 = vmatpush1.msra.mxu0 %v83
    %138 = vmatprep.subr.mxu0 0.0
    %139 = vmatpush1.msra.mxu0 %v84
    %140 = vmatprep.subr.mxu0 0.0
    %141 = vmatpush1.msra.mxu0 %v85
    %142 = vmatprep.subr.mxu0 0.0
    %143 = vmatpush1.msra.mxu0 %v86
    %144 = vmatprep.subr.mxu0 0.0
    %145 = vmatpush1.msra.mxu0 %v87
    %146 = vmatprep.subr.mxu0 0.0
    %147 = vmatpush1.msra.mxu0 %v88
    %148 = vmatprep.subr.mxu0 0.0
    %149 = vmatpush1.msra.mxu0 %v89
    %150 = vmatprep.subr.mxu0 0.0
    %151 = vmatpush1.msra.mxu0 %v90
    %152 = vmatprep.subr.mxu0 0.0
    %153 = vmatpush1.msra.mxu0 %v91
    %154 = vmatprep.subr.mxu0 0.0
    %155 = vmatpush1.msra.mxu0 %v92
    %156 = vmatprep.subr.mxu0 0.0
    %157 = vmatpush1.msra.mxu0 %v93
    %158 = vmatprep.mubr.f32.mxu0 %v59
    %159 = vmatmul.mubr.f32.gmra.mrb[0].mxu0 %v58
    %v160 = vpop.f32.mrb[0].mxu0
    %v161 = vadd.f32 0.0, %v160
    %v162 = vpop.f32.mrb[0].mxu0
    %163 = vmatprep.mubr.f32.mxu0 %v61
    %164 = vmatmul.mubr.f32.gmra.mrb[0].mxu0 %v60
    %v165 = vpop.f32.mrb[0].mxu0
    %v166 = vadd.f32 0.0, %v165
    %v167 = vpop.f32.mrb[0].mxu0
    %168 = vdwg.mxu0
    %v169 = vadd.f32 %v56, %v161
    %v170 = vadd.f32 %v57, %v166
    %171 = vst [vmem:[#allocation7] sm:$0xff] %v169
    %172 = vst [vmem:[#allocation7 + $0x8] sm:$0xff] %v170
    // Predicated region
    $region26: #{linear_allreduce.1} parent=1 // pred_check
      _
    $region27: #{linear_allreduce.1} parent=1 // pred_check_branch
      %174 = sbr.rel (0) target = $region29
    $region28: #{linear_allreduce.1} parent=1 // pred_region
      %s176 = ssub.s32 256, 256
      %177 = vsyncadd [#allocation4], %s176
      %s178 = sshll.u32 [#allocation7], 4
      %s179 = int_to_ptr.vmem [resolvable:$true] %s178
      %184 = dma.vmem_to_hbm [thread:$0]  %s179, 256, %s3, [#allocation4], 128, 128, 8
    $region29: #{linear_allreduce.1} parent=1 // pred_fallthru
      _
    // Predicated region
    $region30: #{linear_allreduce.1} parent=1 // pred_check
      _
    $region31: #{linear_allreduce.1} parent=1 // pred_check_branch
      %186 = sbr.rel (0) target = $region33
    $region32: #{linear_allreduce.1} parent=1 // pred_region
      %187 = dma.done [#allocation4], 256
    $region33: #{linear_allreduce.1} parent=1 // pred_fallthru
      _
    %188 = vsyncpa [#allocation3], 1
    %189 = vsyncpa [#allocation6], 1
    %190 = vsyncpa [#allocation4], 1

</llo_original>
